<compile_context>
chip_gen: v7x
topology: tpu7x:2x2x1
jax: 0.10.0
libtpu: 0.0.40
codegen_flags: <defaults>
</compile_context>

<pallas_src>
import functools

import jax
import jax.numpy as jnp
from jax import lax
from jax.experimental import pallas as pl
from jax.experimental.pallas import tpu as pltpu

LANES = 128
EMB_DIM = 32


def _round_up(n, m):
    return (n + m - 1) // m * m


# ---------------------------------------------------------------------------
# Pallas kernel
# ---------------------------------------------------------------------------
def ddim_forward_kernel(input_dim, con_dim, row_off,
                        emb_ref, con_ref, x_ref, eps_ref, ab_ref, w_ref, out_ref):
    d, c = input_dim, con_dim
    (R_XR, R_CR, R_BIAS, R_W2E, R_W2, R_W3, R_W4, R_W5) = row_off

    ab = ab_ref[...]                                   # (TM, 1)
    sab = jnp.sqrt(ab)                                 # EUP, once per row
    s1ab = jnp.sqrt(1.0 - ab)
    xv = x_ref[...]                                    # (TM, d)
    ev = eps_ref[...]                                  # (TM, d)
    cv = con_ref[...]                                  # (TM, c)

    # ---- layer 1 (+ fused con@w2c + b2 routed to lanes 32..63, 1.0 at lane 127).
    #      K = d + c is tiny, so this is a short VPU broadcast-FMA chain; the
    #      bias row already carries [alpha*w1a+b1 | b2 | 0.. | 1.0@127].
    pre1 = w_ref[R_BIAS:R_BIAS + 1, :]                 # (1, 128)
    for k in range(d):
        xt_k = sab * xv[:, k:k + 1] + s1ab * ev[:, k:k + 1]          # (TM, 1)
        pre1 = pre1 + xt_k * w_ref[R_XR + k:R_XR + k + 1, :]
    for k in range(c):
        pre1 = pre1 + cv[:, k:k + 1] * w_ref[R_CR + k:R_CR + k + 1, :]

    lane = lax.broadcasted_iota(jnp.int32, (1, LANES), 1)
    # ReLU only on the layer-1 lanes (0..31); lanes 32..63 carry con@w2c + b2
    # (pre-activation of layer 2) and lane 127 carries the 1.0 used to fold the
    # remaining biases into the MXU blocks.
    h1 = jnp.where(lane < EMB_DIM, jnp.maximum(pre1, 0.0), pre1)

    dot = functools.partial(jnp.dot, preferred_element_type=jnp.float32)

    # ---- layer 2: main push consumes [relu(h1pre) | con@w2c+b2 | ... | 1], the
    #      independent K=32 push consumes the embedding rows (emb @ w2h).
    h2 = jnp.maximum(dot(h1, w_ref[R_W2:R_W2 + LANES, :])
                     + dot(emb_ref[...], w_ref[R_W2E:R_W2E + EMB_DIM, :]), 0.0)
    # ---- layers 3..5: single padded 128x128 MXU pushes, biases folded via lane 127.
    h3 = jnp.maximum(dot(h2, w_ref[R_W3:R_W3 + LANES, :]), 0.0)
    h4 = jnp.maximum(dot(h3, w_ref[R_W4:R_W4 + LANES, :]), 0.0)
    out = dot(h4, w_ref[R_W5:R_W5 + LANES, :])
    out_ref[...] = out[:, :d]                          # only d real lanes go to HBM


# ---------------------------------------------------------------------------
# One-time host-side parameter packing into a single (568, 128) weight slab
# ---------------------------------------------------------------------------
def pack_params(params, alpha, input_dim, con_dim):
    (w1x, w1c, w1a, b1, w2h, w2c, b2, w3, b3, w4, b4, w5, b5) = params
    d, c = input_dim, con_dim
    assert d <= 64 and EMB_DIM == 32
    f32 = jnp.float32

    strips, offs = [], []
    r = 0

    def add(a, rows):
        nonlocal r
        a = jnp.asarray(a, f32)
        a = jnp.pad(a, ((0, rows - a.shape[0]), (0, LANES - a.shape[1])))
        offs.append(r)
        strips.append(a)
        r += rows

    # FMA rows for the tiny-K layer-1 contraction (+ fused con@w2c for layer 2)
    add(w1x, _round_up(d, 8))                               # R_XR : [w1x[k] | 0..]
    add(jnp.concatenate([w1c, w2c], axis=1), _round_up(c, 8))   # R_CR : [w1c[k] | w2c[k] | 0..]
    bias = jnp.zeros((1, LANES), f32)
    bias = bias.at[0, 0:32].set((alpha * w1a + b1).reshape(32))   # one-time alpha fold
    bias = bias.at[0, 32:64].set(b2.reshape(32))
    bias = bias.at[0, LANES - 1].set(1.0)                   # seeds the always-1 lane
    add(bias, 8)                                            # R_BIAS

    # MXU blocks
    add(w2h, 32)                                            # R_W2E : emb @ w2h (K=32)

    W2 = jnp.zeros((LANES, LANES), f32)
    W2 = W2.at[0:32, 0:32].set(w2h)
    W2 = W2.at[32:64, 0:32].set(jnp.eye(32, dtype=f32))     # pass-through of con@w2c + b2
    W2 = W2.at[LANES - 1, LANES - 1].set(1.0)               # propagate the 1-lane
    add(W2, LANES)                                          # R_W2

    W3 = jnp.zeros((LANES, LANES), f32)
    W3 = W3.at[0:32, 0:64].set(w3)
    W3 = W3.at[LANES - 1, 0:64].set(b3.reshape(64))
    W3 = W3.at[LANES - 1, LANES - 1].set(1.0)
    add(W3, LANES)                                          # R_W3

    W4 = jnp.zeros((LANES, LANES), f32)
    W4 = W4.at[0:64, 0:32].set(w4)
    W4 = W4.at[LANES - 1, 0:32].set(b4.reshape(32))
    W4 = W4.at[LANES - 1, LANES - 1].set(1.0)
    add(W4, LANES)                                          # R_W4

    W5 = jnp.zeros((LANES, LANES), f32)
    W5 = W5.at[0:32, 0:d].set(w5)
    W5 = W5.at[LANES - 1, 0:d].set(b5.reshape(d))
    add(W5, LANES)                                          # R_W5

    return jnp.concatenate(strips, axis=0), tuple(offs)


# ---------------------------------------------------------------------------
# Wrapper: separate narrow inputs, batch tiling, pallas_call
# ---------------------------------------------------------------------------
def _choose_tile(B):
    if B < 128:
        return _round_up(B, 8)            # single small tile (latency path)
    # >= 2 grid steps so "parallel" can split across v7x's two TensorCores;
    # tiles up to 512 rows amortize the ~0.35us/step overhead on v5e/v6e.
    return min(512, _round_up((B + 1) // 2, 8))


def ddim_penalty_forward(w_slab, row_off, x, con_x, eps, used_ab, emb_rows):
    B, d = x.shape
    c = con_x.shape[1]

    TM = _choose_tile(B)
    Bp = _round_up(B, TM)

    def prep(a):
        a = a.astype(jnp.float32)
        return a if Bp == B else jnp.pad(a, ((0, Bp - B), (0, 0)))

    emb_rows, con_x, x, eps, used_ab = map(prep, (emb_rows, con_x, x, eps, used_ab))

    kernel = functools.partial(ddim_forward_kernel, d, c, row_off)
    out = pl.pallas_call(
        kernel,
        out_shape=jax.ShapeDtypeStruct((Bp, d), jnp.float32),
        grid=(Bp // TM,),
        in_specs=[
            pl.BlockSpec((TM, EMB_DIM), lambda i: (i, 0)),
            pl.BlockSpec((TM, c), lambda i: (i, 0)),
            pl.BlockSpec((TM, d), lambda i: (i, 0)),
            pl.BlockSpec((TM, d), lambda i: (i, 0)),
            pl.BlockSpec((TM, 1), lambda i: (i, 0)),
            pl.BlockSpec(w_slab.shape, lambda i: (0, 0)),   # VMEM-resident weights
        ],
        out_specs=pl.BlockSpec((TM, d), lambda i: (i, 0)),
        compiler_params=pltpu.CompilerParams(dimension_semantics=("parallel",)),
    )(emb_rows, con_x, x, eps, used_ab, w_slab)
    return out[:B]


# ---------------------------------------------------------------------------
# Deterministic parameter init (torch default: U(-1/sqrt(fan_in), 1/sqrt(fan_in)))
# ---------------------------------------------------------------------------
def _linear_init(key, fan_in, fan_out):
    kw, kb = jax.random.split(key)
    bound = 1.0 / jnp.sqrt(float(fan_in))
    w = jax.random.uniform(kw, (fan_in, fan_out), jnp.float32, -bound, bound)
    b = jax.random.uniform(kb, (1, fan_out), jnp.float32, -bound, bound)
    return w, b


def init_params(key, T, input_dim, con_dim):
    keys = jax.random.split(key, 6)
    w1, b1 = _linear_init(keys[0], input_dim + con_dim + 1, 32)
    w1x, w1c, w1a = (w1[:input_dim], w1[input_dim:input_dim + con_dim],
                     w1[input_dim + con_dim:])
    emb_table = jax.random.normal(keys[1], (T, 32), jnp.float32)   # Embedding ~ N(0,1)
    w2, b2 = _linear_init(keys[2], 32 + con_dim, 32)
    w2h, w2c = w2[:32], w2[32:]
    w3, b3 = _linear_init(keys[3], 32, 64)
    w4, b4 = _linear_init(keys[4], 64, 32)
    w5, b5 = _linear_init(keys[5], 32, input_dim)
    params = (w1x, w1c, w1a, b1, w2h, w2c, b2, w3, b3, w4, b4, w5, b5)
    return params, emb_table


# ---------------------------------------------------------------------------
# Main
# ---------------------------------------------------------------------------
if __name__ == "__main__":
    beta_1, beta_T, T = 1e-4, 0.02, 16
    input_dim, con_dim = 1, 4
    alpha_hp = 0.1
    B = 8

    alpha_bars = jnp.cumprod(1.0 - jnp.linspace(beta_1, beta_T, T),
                             axis=0).astype(jnp.float32)

    root = jax.random.PRNGKey(0)
    k_param, k_x, k_con, k_idx, k_eps = jax.random.split(root, 5)

    params, emb_table = init_params(k_param, T, input_dim, con_dim)
    w_slab, row_off = pack_params(params, alpha_hp, input_dim, con_dim)

    # inputs (training-phase forward: idx == None branch); the randint/randn
    # perturbation and the embedding-row gather stay as JAX glue.
    x = jax.random.normal(k_x, (B, input_dim), jnp.float32)
    con_x = jax.random.normal(k_con, (B, con_dim), jnp.float32)
    idx = jax.random.randint(k_idx, (B,), 0, T)
    epsilon = jax.random.normal(k_eps, (B, input_dim), jnp.float32)
    used_alpha_bars = alpha_bars[idx][:, None]            # (B, 1)
    emb_rows = emb_table[idx]                             # (B, 32)

    out = ddim_penalty_forward(w_slab, row_off, x, con_x, epsilon,
                               used_alpha_bars, emb_rows)
    out = jax.block_until_ready(out)

    # pure-JAX reference of the same forward for a sanity check
    w1x, w1c, w1a, b1, w2h, w2c, b2, w3, b3, w4, b4, w5, b5 = params
    x_tilde = jnp.sqrt(used_alpha_bars) * x + jnp.sqrt(1.0 - used_alpha_bars) * epsilon
    h1 = jnp.maximum(x_tilde @ w1x + con_x @ w1c + alpha_hp * w1a + b1, 0.0) + emb_rows
    h2 = jnp.maximum(h1 @ w2h + con_x @ w2c + b2, 0.0)
    h3 = jnp.maximum(h2 @ w3 + b3, 0.0)
    h4 = jnp.maximum(h3 @ w4 + b4, 0.0)
    ref = h4 @ w5 + b5
    assert jnp.allclose(out, ref, atol=1e-4, rtol=1e-4), \
        float(jnp.max(jnp.abs(out - ref)))

    # TODO(synk): loss_fn / sampling use host-side numpy percentiles and a full
    # reverse-diffusion python loop; only the forward() hot path is kernelized.
    print("KERNEL_OK")
</pallas_src>

<mosaic_0001>
module attributes {stable_mosaic.version = 11 : i64} {
  func.func @ddim_forward_kernel(%arg0: i32, %arg1: memref<8x32xf32, #tpu.memory_space<vmem>>, %arg2: memref<8x4xf32, #tpu.memory_space<vmem>>, %arg3: memref<8x1xf32, #tpu.memory_space<vmem>>, %arg4: memref<8x1xf32, #tpu.memory_space<vmem>>, %arg5: memref<8x1xf32, #tpu.memory_space<vmem>>, %arg6: memref<568x128xf32, #tpu.memory_space<vmem>>, %arg7: memref<8x1xf32, #tpu.memory_space<vmem>>) attributes {dimension_semantics = [#tpu.dimension_semantics<parallel>], iteration_bounds = array<i64: 1>, scalar_prefetch = 0 : i64, scratch_operands = 0 : i64, tpu.core_type = #tpu.core_type<tc>, window_params = [{transform_indices = @transform_0, window_bounds = array<i64: 8, 32>}, {transform_indices = @transform_1, window_bounds = array<i64: 8, 4>}, {transform_indices = @transform_2, window_bounds = array<i64: 8, 1>}, {transform_indices = @transform_3, window_bounds = array<i64: 8, 1>}, {transform_indices = @transform_4, window_bounds = array<i64: 8, 1>}, {pipeline_mode = #tpu.pipeline_mode<synchronous>, transform_indices = @transform_5, window_bounds = array<i64: 568, 128>}, {transform_indices = @transform_6, window_bounds = array<i64: 8, 1>}]} {
    %c0 = arith.constant 0 : index
    %c0_0 = arith.constant 0 : index
    %0 = vector.load %arg5[%c0, %c0_0] : memref<8x1xf32, #tpu.memory_space<vmem>>, vector<8x1xf32>
    %1 = math.sqrt %0 : vector<8x1xf32>
    %cst = arith.constant 1.000000e+00 : f32
    %2 = vector.broadcast %cst : f32 to vector<8x1xf32>
    %3 = arith.subf %2, %0 : vector<8x1xf32>
    %4 = math.sqrt %3 : vector<8x1xf32>
    %c0_1 = arith.constant 0 : index
    %c0_2 = arith.constant 0 : index
    %5 = vector.load %arg3[%c0_1, %c0_2] : memref<8x1xf32, #tpu.memory_space<vmem>>, vector<8x1xf32>
    %c0_3 = arith.constant 0 : index
    %c0_4 = arith.constant 0 : index
    %6 = vector.load %arg4[%c0_3, %c0_4] : memref<8x1xf32, #tpu.memory_space<vmem>>, vector<8x1xf32>
    %c0_5 = arith.constant 0 : index
    %c0_6 = arith.constant 0 : index
    %7 = vector.load %arg2[%c0_5, %c0_6] : memref<8x4xf32, #tpu.memory_space<vmem>>, vector<8x4xf32>
    %c16 = arith.constant 16 : index
    %c0_7 = arith.constant 0 : index
    %8 = vector.load %arg6[%c16, %c0_7] : memref<568x128xf32, #tpu.memory_space<vmem>>, vector<1x128xf32>
    %9 = arith.mulf %1, %5 : vector<8x1xf32>
    %10 = arith.mulf %4, %6 : vector<8x1xf32>
    %11 = arith.addf %9, %10 : vector<8x1xf32>
    %c0_8 = arith.constant 0 : index
    %c0_9 = arith.constant 0 : index
    %12 = vector.load %arg6[%c0_8, %c0_9] : memref<568x128xf32, #tpu.memory_space<vmem>>, vector<1x128xf32>
    %13 = vector.broadcast %11 : vector<8x1xf32> to vector<8x128xf32>
    %14 = vector.broadcast %12 : vector<1x128xf32> to vector<8x128xf32>
    %15 = arith.mulf %13, %14 : vector<8x128xf32>
    %16 = vector.broadcast %8 : vector<1x128xf32> to vector<8x128xf32>
    %17 = arith.addf %16, %15 : vector<8x128xf32>
    %18 = vector.extract_strided_slice %7 {offsets = [0, 0], sizes = [8, 1], strides = [1, 1]} : vector<8x4xf32> to vector<8x1xf32>
    %c8 = arith.constant 8 : index
    %c0_10 = arith.constant 0 : index
    %19 = vector.load %arg6[%c8, %c0_10] : memref<568x128xf32, #tpu.memory_space<vmem>>, vector<1x128xf32>
    %20 = vector.broadcast %18 : vector<8x1xf32> to vector<8x128xf32>
    %21 = vector.broadcast %19 : vector<1x128xf32> to vector<8x128xf32>
    %22 = arith.mulf %20, %21 : vector<8x128xf32>
    %23 = arith.addf %17, %22 : vector<8x128xf32>
    %24 = vector.extract_strided_slice %7 {offsets = [0, 1], sizes = [8, 1], strides = [1, 1]} : vector<8x4xf32> to vector<8x1xf32>
    %c9 = arith.constant 9 : index
    %c0_11 = arith.constant 0 : index
    %25 = vector.load %arg6[%c9, %c0_11] : memref<568x128xf32, #tpu.memory_space<vmem>>, vector<1x128xf32>
    %26 = vector.broadcast %24 : vector<8x1xf32> to vector<8x128xf32>
    %27 = vector.broadcast %25 : vector<1x128xf32> to vector<8x128xf32>
    %28 = arith.mulf %26, %27 : vector<8x128xf32>
    %29 = arith.addf %23, %28 : vector<8x128xf32>
    %30 = vector.extract_strided_slice %7 {offsets = [0, 2], sizes = [8, 1], strides = [1, 1]} : vector<8x4xf32> to vector<8x1xf32>
    %c10 = arith.constant 10 : index
    %c0_12 = arith.constant 0 : index
    %31 = vector.load %arg6[%c10, %c0_12] : memref<568x128xf32, #tpu.memory_space<vmem>>, vector<1x128xf32>
    %32 = vector.broadcast %30 : vector<8x1xf32> to vector<8x128xf32>
    %33 = vector.broadcast %31 : vector<1x128xf32> to vector<8x128xf32>
    %34 = arith.mulf %32, %33 : vector<8x128xf32>
    %35 = arith.addf %29, %34 : vector<8x128xf32>
    %36 = vector.extract_strided_slice %7 {offsets = [0, 3], sizes = [8, 1], strides = [1, 1]} : vector<8x4xf32> to vector<8x1xf32>
    %c11 = arith.constant 11 : index
    %c0_13 = arith.constant 0 : index
    %37 = vector.load %arg6[%c11, %c0_13] : memref<568x128xf32, #tpu.memory_space<vmem>>, vector<1x128xf32>
    %38 = vector.broadcast %36 : vector<8x1xf32> to vector<8x128xf32>
    %39 = vector.broadcast %37 : vector<1x128xf32> to vector<8x128xf32>
    %40 = arith.mulf %38, %39 : vector<8x128xf32>
    %41 = arith.addf %35, %40 : vector<8x128xf32>
    %42 = tpu.iota {dimensions = array<i32: 1>} : vector<1x128xi32>
    %c32_i32 = arith.constant 32 : i32
    %43 = vector.broadcast %c32_i32 : i32 to vector<1x128xi32>
    %44 = arith.cmpi slt, %42, %43 : vector<1x128xi32>
    %cst_14 = arith.constant 0.000000e+00 : f32
    %45 = vector.broadcast %cst_14 : f32 to vector<8x128xf32>
    %46 = arith.maximumf %41, %45 : vector<8x128xf32>
    %47 = vector.shape_cast %44 : vector<1x128xi1> to vector<1x128xi1>
    %48 = vector.broadcast %47 : vector<1x128xi1> to vector<8x128xi1>
    %49 = arith.select %48, %46, %41 : vector<8x128xi1>, vector<8x128xf32>
    %c56 = arith.constant 56 : index
    %c0_15 = arith.constant 0 : index
    %50 = vector.load %arg6[%c56, %c0_15] : memref<568x128xf32, #tpu.memory_space<vmem>>, vector<128x128xf32>
    %cst_16 = arith.constant dense<0.000000e+00> : vector<8x128xf32>
    %51 = tpu.matmul %49, %50, %cst_16 {dimension_numbers = #tpu.dot_dimension_numbers<[1], [0], [0], [1], [0, 0, 1, 1], [], []>} : vector<8x128xf32>, vector<128x128xf32>, vector<8x128xf32> -> vector<8x128xf32>
    %c0_17 = arith.constant 0 : index
    %c0_18 = arith.constant 0 : index
    %52 = vector.load %arg1[%c0_17, %c0_18] : memref<8x32xf32, #tpu.memory_space<vmem>>, vector<8x32xf32>
    %c24 = arith.constant 24 : index
    %c0_19 = arith.constant 0 : index
    %53 = vector.load %arg6[%c24, %c0_19] : memref<568x128xf32, #tpu.memory_space<vmem>>, vector<32x128xf32>
    %cst_20 = arith.constant dense<0.000000e+00> : vector<8x128xf32>
    %54 = tpu.matmul %52, %53, %cst_20 {dimension_numbers = #tpu.dot_dimension_numbers<[1], [0], [0], [1], [0, 0, 1, 1], [], []>} : vector<8x32xf32>, vector<32x128xf32>, vector<8x128xf32> -> vector<8x128xf32>
    %55 = arith.addf %51, %54 : vector<8x128xf32>
    %cst_21 = arith.constant 0.000000e+00 : f32
    %56 = vector.broadcast %cst_21 : f32 to vector<8x128xf32>
    %57 = arith.maximumf %55, %56 : vector<8x128xf32>
    %c184 = arith.constant 184 : index
    %c0_22 = arith.constant 0 : index
    %58 = vector.load %arg6[%c184, %c0_22] : memref<568x128xf32, #tpu.memory_space<vmem>>, vector<128x128xf32>
    %cst_23 = arith.constant dense<0.000000e+00> : vector<8x128xf32>
    %59 = tpu.matmul %57, %58, %cst_23 {dimension_numbers = #tpu.dot_dimension_numbers<[1], [0], [0], [1], [0, 0, 1, 1], [], []>} : vector<8x128xf32>, vector<128x128xf32>, vector<8x128xf32> -> vector<8x128xf32>
    %cst_24 = arith.constant 0.000000e+00 : f32
    %60 = vector.broadcast %cst_24 : f32 to vector<8x128xf32>
    %61 = arith.maximumf %59, %60 : vector<8x128xf32>
    %c312 = arith.constant 312 : index
    %c0_25 = arith.constant 0 : index
    %62 = vector.load %arg6[%c312, %c0_25] : memref<568x128xf32, #tpu.memory_space<vmem>>, vector<128x128xf32>
    %cst_26 = arith.constant dense<0.000000e+00> : vector<8x128xf32>
    %63 = tpu.matmul %61, %62, %cst_26 {dimension_numbers = #tpu.dot_dimension_numbers<[1], [0], [0], [1], [0, 0, 1, 1], [], []>} : vector<8x128xf32>, vector<128x128xf32>, vector<8x128xf32> -> vector<8x128xf32>
    %cst_27 = arith.constant 0.000000e+00 : f32
    %64 = vector.broadcast %cst_27 : f32 to vector<8x128xf32>
    %65 = arith.maximumf %63, %64 : vector<8x128xf32>
    %c440 = arith.constant 440 : index
    %c0_28 = arith.constant 0 : index
    %66 = vector.load %arg6[%c440, %c0_28] : memref<568x128xf32, #tpu.memory_space<vmem>>, vector<128x128xf32>
    %cst_29 = arith.constant dense<0.000000e+00> : vector<8x128xf32>
    %67 = tpu.matmul %65, %66, %cst_29 {dimension_numbers = #tpu.dot_dimension_numbers<[1], [0], [0], [1], [0, 0, 1, 1], [], []>} : vector<8x128xf32>, vector<128x128xf32>, vector<8x128xf32> -> vector<8x128xf32>
    %68 = vector.extract_strided_slice %67 {offsets = [0, 0], sizes = [8, 1], strides = [1, 1]} : vector<8x128xf32> to vector<8x1xf32>
    %c0_30 = arith.constant 0 : index
    %c0_31 = arith.constant 0 : index
    %69 = vector.load %arg7[%c0_30, %c0_31] : memref<8x1xf32, #tpu.memory_space<vmem>>, vector<8x1xf32>
    tpu.vector_store %arg7[%c0_30, %c0_31], %68 {strides = array<i32>} : memref<8x1xf32, #tpu.memory_space<vmem>>, vector<8x1xf32>,
    return
  }
  func.func @transform_0(%arg0: i32) -> (i32, i32) {
    %c0_i32 = arith.constant 0 : i32
    %c0_i32_0 = arith.constant 0 : i32
    return %arg0, %c0_i32 : i32, i32
  }
  func.func @transform_1(%arg0: i32) -> (i32, i32) {
    %c0_i32 = arith.constant 0 : i32
    %c0_i32_0 = arith.constant 0 : i32
    return %arg0, %c0_i32 : i32, i32
  }
  func.func @transform_2(%arg0: i32) -> (i32, i32) {
    %c0_i32 = arith.constant 0 : i32
    %c0_i32_0 = arith.constant 0 : i32
    return %arg0, %c0_i32 : i32, i32
  }
  func.func @transform_3(%arg0: i32) -> (i32, i32) {
    %c0_i32 = arith.constant 0 : i32
    %c0_i32_0 = arith.constant 0 : i32
    return %arg0, %c0_i32 : i32, i32
  }
  func.func @transform_4(%arg0: i32) -> (i32, i32) {
    %c0_i32 = arith.constant 0 : i32
    %c0_i32_0 = arith.constant 0 : i32
    return %arg0, %c0_i32 : i32, i32
  }
  func.func @transform_5(%arg0: i32) -> (i32, i32) {
    %c0_i32 = arith.constant 0 : i32
    %c0_i32_0 = arith.constant 0 : i32
    %c0_i32_1 = arith.constant 0 : i32
    return %c0_i32, %c0_i32_0 : i32, i32
  }
  func.func @transform_6(%arg0: i32) -> (i32, i32) {
    %c0_i32 = arith.constant 0 : i32
    %c0_i32_0 = arith.constant 0 : i32
    return %arg0, %c0_i32 : i32, i32
  }
}

</mosaic_0001>

<llo_original>
// kernel: tpu_custom_call.1
$region0: #{tpu_custom_call.1}
  #allocation0 [shape = 'u32[]', space=smem, size = 0x4, offset = 0x4, fixed_abs, tag = 'smem constant byte address 0x4 - core index']
  #allocation1 [shape = 'u32[144,128]{1,0:T(1,128)}', space=vmem, size = 0x12000, scoped, tag = 'internal scratch']
  %s0 = inlined_call_operand.vmem [shape: f32[8,32], index: 0, kind: input, shape index: {}]
  %s1 = inlined_call_operand.vmem [shape: f32[8,4], index: 1, kind: input, shape index: {}]
  %s2 = inlined_call_operand.vmem [shape: f32[8,1], index: 2, kind: input, shape index: {}]
  %s3 = inlined_call_operand.vmem [shape: f32[8,1], index: 3, kind: input, shape index: {}]
  %s4 = inlined_call_operand.vmem [shape: f32[8,1], index: 4, kind: input, shape index: {}]
  %s5 = inlined_call_operand.hbm [shape: f32[568,128], index: 5, kind: input, shape index: {}]
  %s6 = inlined_call_operand.vmem [shape: f32[8,1], index: 6, kind: output, shape index: {}]
  %s7 = sld [smem:[#allocation0]]
  $region38: #{tpu_custom_call.1} parent=0
    _
  %s9 = ssub.s32 1, %s7
  %s10 = scalar_select 0, %s9, %s7
  $region1: #{tpu_custom_call.1} parent=0
    #allocation2 [shape = 'u8[290816]{0}', space=vmem, size = 0x47000, scoped, tag = 'input window, operand 5, single buffered']
    #allocation3 [shape = 's32[1]{0}', space=sflag, size = 0x4, scoped, tag = 'scoped memory for tpu_custom_call.1']
    %11 = vsyncpa [#allocation3], 0
    // Predicated region
    $region2: #{tpu_custom_call.1} parent=1 // pred_check
      _
    $region3: #{tpu_custom_call.1} parent=1 // pred_check_branch
      %13 = sbr.rel (0) target = $region5
    $region4: #{tpu_custom_call.1} parent=1 // pred_region
      _
    $region5: #{tpu_custom_call.1} parent=1 // pred_fallthru
      _
    // Predicated region
    $region6: #{tpu_custom_call.1} parent=1 // pred_check
      _
    $region7: #{tpu_custom_call.1} parent=1 // pred_check_branch
      %15 = sbr.rel (0) target = $region9
    $region8: #{tpu_custom_call.1} parent=1 // pred_region
      _
    $region9: #{tpu_custom_call.1} parent=1 // pred_fallthru
      _
    // Predicated region
    $region10: #{tpu_custom_call.1} parent=1 // pred_check
      _
    $region11: #{tpu_custom_call.1} parent=1 // pred_check_branch
      %17 = sbr.rel (0) target = $region13
    $region12: #{tpu_custom_call.1} parent=1 // pred_region
      _
    $region13: #{tpu_custom_call.1} parent=1 // pred_fallthru
      _
    // Predicated region
    $region14: #{tpu_custom_call.1} parent=1 // pred_check
      _
    $region15: #{tpu_custom_call.1} parent=1 // pred_check_branch
      %19 = sbr.rel (0) target = $region17
    $region16: #{tpu_custom_call.1} parent=1 // pred_region
      _
    $region17: #{tpu_custom_call.1} parent=1 // pred_fallthru
      _
    // Predicated region
    $region18: #{tpu_custom_call.1} parent=1 // pred_check
      _
    $region19: #{tpu_custom_call.1} parent=1 // pred_check_branch
      %21 = sbr.rel (0) target = $region21
    $region20: #{tpu_custom_call.1} parent=1 // pred_region
      _
    $region21: #{tpu_custom_call.1} parent=1 // pred_fallthru
      _
    // Predicated region
    $region22: #{tpu_custom_call.1} parent=1 // pred_check
      _
    $region23: #{tpu_custom_call.1} parent=1 // pred_check_branch
      %23 = sbr.rel (0) target = $region25
    $region24: #{tpu_custom_call.1} parent=1 // pred_region
      %s25 = ssub.s32 9088, 9088
      %26 = vsyncadd [#allocation3], %s25
      %s27 = sshll.u32 [#allocation2], 4
      %s28 = int_to_ptr.vmem [resolvable:$true] %s27
      %33 = dma.hbm_to_vmem [thread:$0]  %s5, 9088, %s28, [#allocation3], 128, 128, 8
    $region25: #{tpu_custom_call.1} parent=1 // pred_fallthru
      _
    // Predicated region
    $region26: #{tpu_custom_call.1} parent=1 // pred_check
      _
    $region27: #{tpu_custom_call.1} parent=1 // pred_check_branch
      %35 = sbr.rel (0) target = $region29
    $region28: #{tpu_custom_call.1} parent=1 // pred_region
      %36 = dma.done [#allocation3], 9088
    $region29: #{tpu_custom_call.1} parent=1 // pred_fallthru
      _
    %v37 = vld [vmem:[%s4] sm:$0xff]
    %v38 = vrsqrt.pop %v37
    %v39 = vmul.f32 %v37, %v38
    %vm40 = vcmp.eq.f32.partialorder %v37, inf
    %v41 = vsel %vm40, %v37, %v39
    %vm42 = vcmp.eq.f32.partialorder %v37, 0.0
    %v43 = vand.u32 %v37, 2147483648
    %v44 = vsel %vm42, %v43, %v41
    %v45 = vsub.f32 1.0, %v37
    %v46 = vrsqrt.pop %v45
    %v47 = vmul.f32 %v45, %v46
    %vm48 = vcmp.eq.f32.partialorder %v45, inf
    %v49 = vsel %vm48, %v45, %v47
    %vm50 = vcmp.eq.f32.partialorder %v45, 0.0
    %v51 = vand.u32 %v45, 2147483648
    %v52 = vsel %vm50, %v51, %v49
    %v53 = vld [vmem:[%s2] sm:$0xff]
    %v54 = vld [vmem:[%s3] sm:$0xff]
    %v55 = vld [vmem:[%s1] sm:$0xff]
    %v56 = vld [vmem:[#allocation2 + $0x10] sm:$0x1]
    %v57 = vmul.f32 %v44, %v53
    %v58 = vmul.f32 %v52, %v54
    %v59 = vadd.f32 %v57, %v58
    %v60 = vld [vmem:[#allocation2] sm:$0x1]
    %62 = vset.pattern.permute.xlu0 0
    %63 = vperm.xlu0 %62, %v59
    %v64 = vpop.permute.xlu0 %63
    %v66 = vlaneseq
    %v67 = vshrl.u32 %v66, 7
    %v68 = vsub.s32 0, %v67
    %v69 = vrot.slane %v60, %v68
    %v70 = vmul.f32 %v64, %v69
    %v71 = vlaneseq
    %v72 = vshrl.u32 %v71, 7
    %v73 = vsub.s32 0, %v72
    %v74 = vrot.slane %v56, %v73
    %v75 = vadd.f32 %v74, %v70
    %v76 = vld [vmem:[#allocation2 + $0x8] sm:$0x1]
    %78 = vset.pattern.permute.xlu0 0
    %79 = vperm.xlu0 %78, %v55
    %v80 = vpop.permute.xlu0 %79
    %v82 = vlaneseq
    %v83 = vshrl.u32 %v82, 7
    %v84 = vsub.s32 0, %v83
    %v85 = vrot.slane %v76, %v84
    %v86 = vmul.f32 %v80, %v85
    %v87 = vadd.f32 %v75, %v86
    %v88 = vld [vmem:[#allocation2 + $0x9] sm:$0x1]
    %89 = vset.pattern.permute.xlu0 1
    %90 = vperm.xlu0 %89, %v55
    %v91 = vpop.permute.xlu0 %90
    %v93 = vlaneseq
    %v94 = vshrl.u32 %v93, 7
    %v95 = vsub.s32 0, %v94
    %v96 = vrot.slane %v88, %v95
    %v97 = vmul.f32 %v91, %v96
    %v98 = vadd.f32 %v87, %v97
    %v99 = vld [vmem:[#allocation2 + $0xa] sm:$0x1]
    %100 = vset.pattern.permute.xlu0 2
    %101 = vperm.xlu0 %100, %v55
    %v102 = vpop.permute.xlu0 %101
    %v104 = vlaneseq
    %v105 = vshrl.u32 %v104, 7
    %v106 = vsub.s32 0, %v105
    %v107 = vrot.slane %v99, %v106
    %v108 = vmul.f32 %v102, %v107
    %v109 = vadd.f32 %v98, %v108
    %v110 = vld [vmem:[#allocation2 + $0xb] sm:$0x1]
    %111 = vset.pattern.permute.xlu0 3
    %112 = vperm.xlu0 %111, %v55
    %v113 = vpop.permute.xlu0 %112
    %v115 = vlaneseq
    %v116 = vshrl.u32 %v115, 7
    %v117 = vsub.s32 0, %v116
    %v118 = vrot.slane %v110, %v117
    %v119 = vmul.f32 %v113, %v118
    %v120 = vadd.f32 %v109, %v119
    %v121 = vlaneseq
    %v122 = vand.u32 %v121, 127
    %vm123 = vcmp.lt.s32.totalorder %v122, 32
    %v124 = vmax.f32 %v120, 0.0
    %v125 = vsel %vm123, 1, 0
    %vm126 = vcmp.eq.s32.totalorder %v125, 1
    %v127 = vsel %vm126, %v124, %v120
    %v128 = vld [vmem:[#allocation2 + $0x38] sm:$0xff]
    %v129 = vld [vmem:[#allocation2 + $0x40] sm:$0xff]
    %v130 = vld [vmem:[#allocation2 + $0x48] sm:$0xff]
    %v131 = vld [vmem:[#allocation2 + $0x50] sm:$0xff]
    %v132 = vld [vmem:[#allocation2 + $0x58] sm:$0xff]
    %v133 = vld [vmem:[#allocation2 + $0x60] sm:$0xff]
    %v134 = vld [vmem:[#allocation2 + $0x68] sm:$0xff]
    %v135 = vld [vmem:[#allocation2 + $0x70] sm:$0xff]
    %v136 = vld [vmem:[#allocation2 + $0x78] sm:$0xff]
    %v137 = vld [vmem:[#allocation2 + $0x80] sm:$0xff]
    %v138 = vld [vmem:[#allocation2 + $0x88] sm:$0xff]
    %v139 = vld [vmem:[#allocation2 + $0x90] sm:$0xff]
    %v140 = vld [vmem:[#allocation2 + $0x98] sm:$0xff]
    %v141 = vld [vmem:[#allocation2 + $0xa0] sm:$0xff]
    %v142 = vld [vmem:[#allocation2 + $0xa8] sm:$0xff]
    %v143 = vld [vmem:[#allocation2 + $0xb0] sm:$0xff]
    %v144 = vld [vmem:[%s0] sm:$0xff]
    %v145 = vld [vmem:[#allocation2 + $0x18] sm:$0xff]
    %v146 = vld [vmem:[#allocation2 + $0x20] sm:$0xff]
    %v147 = vld [vmem:[#allocation2 + $0x28] sm:$0xff]
    %v148 = vld [vmem:[#allocation2 + $0x30] sm:$0xff]
    %vm149 = vcmask 261120
    %v151 = vsel %vm149, %v144, 0
    %153 = vmatprep.subr.mxu0 0.0
    %154 = vmatpush1.msra.mxu0 %v145
    %155 = vmatprep.subr.mxu0 0.0
    %156 = vmatpush1.msra.mxu0 %v146
    %157 = vmatprep.subr.mxu0 0.0
    %158 = vmatpush1.msra.mxu0 %v147
    %159 = vmatprep.subr.mxu0 0.0
    %160 = vmatpush1.msra.mxu0 %v148
    %161 = vmatprep.subr.mxu0 0.0
    %162 = vmatpush1.msra.mxu0 0.0
    %163 = vmatprep.subr.mxu0 0.0
    %164 = vmatpush1.msra.mxu0 0.0
    %165 = vmatprep.subr.mxu0 0.0
    %166 = vmatpush1.msra.mxu0 0.0
    %167 = vmatprep.subr.mxu0 0.0
    %168 = vmatpush1.msra.mxu0 0.0
    %169 = vmatprep.subr.mxu0 0.0
    %170 = vmatpush1.msra.mxu0 0.0
    %171 = vmatprep.subr.mxu0 0.0
    %172 = vmatpush1.msra.mxu0 0.0
    %173 = vmatprep.subr.mxu0 0.0
    %174 = vmatpush1.msra.mxu0 0.0
    %175 = vmatprep.subr.mxu0 0.0
    %176 = vmatpush1.msra.mxu0 0.0
    %177 = vmatprep.subr.mxu0 0.0
    %178 = vmatpush1.msra.mxu0 0.0
    %179 = vmatprep.subr.mxu0 0.0
    %180 = vmatpush1.msra.mxu0 0.0
    %181 = vmatprep.subr.mxu0 0.0
    %182 = vmatpush1.msra.mxu0 0.0
    %183 = vmatprep.subr.mxu0 0.0
    %184 = vmatpush1.msra.mxu0 0.0
    %185 = vmatprep.subr.mxu0 0.0
    %186 = vmatpush1.msra.mxu0 0.0
    %187 = vmatprep.subr.mxu0 0.0
    %188 = vmatpush1.msra.mxu0 0.0
    %189 = vmatprep.subr.mxu0 0.0
    %190 = vmatpush1.msra.mxu0 0.0
    %191 = vmatprep.subr.mxu0 0.0
    %192 = vmatpush1.msra.mxu0 0.0
    %193 = vmatprep.subr.mxu0 0.0
    %194 = vmatpush1.msra.mxu0 0.0
    %195 = vmatprep.subr.mxu0 0.0
    %196 = vmatpush1.msra.mxu0 0.0
    %197 = vmatprep.subr.mxu0 0.0
    %198 = vmatpush1.msra.mxu0 0.0
    %199 = vmatprep.subr.mxu0 0.0
    %200 = vmatpush1.msra.mxu0 0.0
    %201 = vmatprep.subr.mxu0 0.0
    %202 = vmatpush1.msra.mxu0 0.0
    %203 = vmatprep.subr.mxu0 0.0
    %204 = vmatpush1.msra.mxu0 0.0
    %205 = vmatprep.subr.mxu0 0.0
    %206 = vmatpush1.msra.mxu0 0.0
    %207 = vmatprep.subr.mxu0 0.0
    %208 = vmatpush1.msra.mxu0 0.0
    %209 = vmatprep.subr.mxu0 0.0
    %210 = vmatpush1.msra.mxu0 0.0
    %211 = vmatprep.subr.mxu0 0.0
    %212 = vmatpush1.msra.mxu0 0.0
    %213 = vmatprep.subr.mxu0 0.0
    %214 = vmatpush1.msra.mxu0 0.0
    %215 = vmatprep.subr.mxu0 0.0
    %216 = vmatpush1.msra.mxu0 0.0
    %217 = vmatprep.mubr.f32.mxu0 0.0
    %218 = vmatmul.mubr.f32.gmra.mrb[0].mxu0 %v151
    %v219 = vpop.f32.mrb[0].mxu0
    %v220 = vadd.f32 0.0, %v219
    %v221 = vpop.f32.mrb[0].mxu0
    %222 = vdwg.mxu0
    %223 = vmatprep.subr.mxu0 0.0
    %224 = vmatpush1.msra.mxu0 %v128
    %225 = vmatprep.subr.mxu0 0.0
    %226 = vmatpush1.msra.mxu0 %v129
    %227 = vmatprep.subr.mxu0 0.0
    %228 = vmatpush1.msra.mxu0 %v130
    %229 = vmatprep.subr.mxu0 0.0
    %230 = vmatpush1.msra.mxu0 %v131
    %231 = vmatprep.subr.mxu0 0.0
    %232 = vmatpush1.msra.mxu0 %v132
    %233 = vmatprep.subr.mxu0 0.0
    %234 = vmatpush1.msra.mxu0 %v133
    %235 = vmatprep.subr.mxu0 0.0
    %236 = vmatpush1.msra.mxu0 %v134
    %237 = vmatprep.subr.mxu0 0.0
    %238 = vmatpush1.msra.mxu0 %v135
    %239 = vmatprep.subr.mxu0 0.0
    %240 = vmatpush1.msra.mxu0 %v136
    %241 = vmatprep.subr.mxu0 0.0
    %242 = vmatpush1.msra.mxu0 %v137
    %243 = vmatprep.subr.mxu0 0.0
    %244 = vmatpush1.msra.mxu0 %v138
    %245 = vmatprep.subr.mxu0 0.0
    %246 = vmatpush1.msra.mxu0 %v139
    %247 = vmatprep.subr.mxu0 0.0
    %248 = vmatpush1.msra.mxu0 %v140
    %249 = vmatprep.subr.mxu0 0.0
    %250 = vmatpush1.msra.mxu0 %v141
    %251 = vmatprep.subr.mxu0 0.0
    %252 = vmatpush1.msra.mxu0 %v142
    %253 = vmatprep.subr.mxu0 0.0
    %254 = vmatpush1.msra.mxu0 %v143
    %255 = vmatprep.subr.mxu0 0.0
    %256 = vmatpush1.msra.mxu0 0.0
    %257 = vmatprep.subr.mxu0 0.0
    %258 = vmatpush1.msra.mxu0 0.0
    %259 = vmatprep.subr.mxu0 0.0
    %260 = vmatpush1.msra.mxu0 0.0
    %261 = vmatprep.subr.mxu0 0.0
    %262 = vmatpush1.msra.mxu0 0.0
    %263 = vmatprep.subr.mxu0 0.0
    %264 = vmatpush1.msra.mxu0 0.0
    %265 = vmatprep.subr.mxu0 0.0
    %266 = vmatpush1.msra.mxu0 0.0
    %267 = vmatprep.subr.mxu0 0.0
    %268 = vmatpush1.msra.mxu0 0.0
    %269 = vmatprep.subr.mxu0 0.0
    %270 = vmatpush1.msra.mxu0 0.0
    %271 = vmatprep.subr.mxu0 0.0
    %272 = vmatpush1.msra.mxu0 0.0
    %273 = vmatprep.subr.mxu0 0.0
    %274 = vmatpush1.msra.mxu0 0.0
    %275 = vmatprep.subr.mxu0 0.0
    %276 = vmatpush1.msra.mxu0 0.0
    %277 = vmatprep.subr.mxu0 0.0
    %278 = vmatpush1.msra.mxu0 0.0
    %279 = vmatprep.subr.mxu0 0.0
    %280 = vmatpush1.msra.mxu0 0.0
    %281 = vmatprep.subr.mxu0 0.0
    %282 = vmatpush1.msra.mxu0 0.0
    %283 = vmatprep.subr.mxu0 0.0
    %284 = vmatpush1.msra.mxu0 0.0
    %285 = vmatprep.subr.mxu0 0.0
    %286 = vmatpush1.msra.mxu0 0.0
    %287 = vmatprep.mubr.f32.mxu0 0.0
    %288 = vmatmul.mubr.f32.gmra.mrb[0].mxu0 %v127
    %v289 = vpop.f32.mrb[0].mxu0
    %v290 = vadd.f32 %v220, %v289
    %v291 = vpop.f32.mrb[0].mxu0
    %292 = vdwg.mxu0
    %v293 = vmax.f32 %v290, 0.0
    %v294 = vld [vmem:[#allocation2 + $0xb8] sm:$0xff]
    %v295 = vld [vmem:[#allocation2 + $0xc0] sm:$0xff]
    %v296 = vld [vmem:[#allocation2 + $0xc8] sm:$0xff]
    %v297 = vld [vmem:[#allocation2 + $0xd0] sm:$0xff]
    %v298 = vld [vmem:[#allocation2 + $0xd8] sm:$0xff]
    %v299 = vld [vmem:[#allocation2 + $0xe0] sm:$0xff]
    %v300 = vld [vmem:[#allocation2 + $0xe8] sm:$0xff]
    %v301 = vld [vmem:[#allocation2 + $0xf0] sm:$0xff]
    %v302 = vld [vmem:[#allocation2 + $0xf8] sm:$0xff]
    %v303 = vld [vmem:[#allocation2 + $0x100] sm:$0xff]
    %v304 = vld [vmem:[#allocation2 + $0x108] sm:$0xff]
    %v305 = vld [vmem:[#allocation2 + $0x110] sm:$0xff]
    %v306 = vld [vmem:[#allocation2 + $0x118] sm:$0xff]
    %v307 = vld [vmem:[#allocation2 + $0x120] sm:$0xff]
    %v308 = vld [vmem:[#allocation2 + $0x128] sm:$0xff]
    %v309 = vld [vmem:[#allocation2 + $0x130] sm:$0xff]
    %310 = vmatprep.subr.mxu0 0.0
    %311 = vmatpush1.msra.mxu0 %v294
    %312 = vmatprep.subr.mxu0 0.0
    %313 = vmatpush1.msra.mxu0 %v295
    %314 = vmatprep.subr.mxu0 0.0
    %315 = vmatpush1.msra.mxu0 %v296
    %316 = vmatprep.subr.mxu0 0.0
    %317 = vmatpush1.msra.mxu0 %v297
    %318 = vmatprep.subr.mxu0 0.0
    %319 = vmatpush1.msra.mxu0 %v298
    %320 = vmatprep.subr.mxu0 0.0
    %321 = vmatpush1.msra.mxu0 %v299
    %322 = vmatprep.subr.mxu0 0.0
    %323 = vmatpush1.msra.mxu0 %v300
    %324 = vmatprep.subr.mxu0 0.0
    %325 = vmatpush1.msra.mxu0 %v301
    %326 = vmatprep.subr.mxu0 0.0
    %327 = vmatpush1.msra.mxu0 %v302
    %328 = vmatprep.subr.mxu0 0.0
    %329 = vmatpush1.msra.mxu0 %v303
    %330 = vmatprep.subr.mxu0 0.0
    %331 = vmatpush1.msra.mxu0 %v304
    %332 = vmatprep.subr.mxu0 0.0
    %333 = vmatpush1.msra.mxu0 %v305
    %334 = vmatprep.subr.mxu0 0.0
    %335 = vmatpush1.msra.mxu0 %v306
    %336 = vmatprep.subr.mxu0 0.0
    %337 = vmatpush1.msra.mxu0 %v307
    %338 = vmatprep.subr.mxu0 0.0
    %339 = vmatpush1.msra.mxu0 %v308
    %340 = vmatprep.subr.mxu0 0.0
    %341 = vmatpush1.msra.mxu0 %v309
    %342 = vmatprep.subr.mxu0 0.0
    %343 = vmatpush1.msra.mxu0 0.0
    %344 = vmatprep.subr.mxu0 0.0
    %345 = vmatpush1.msra.mxu0 0.0
    %346 = vmatprep.subr.mxu0 0.0
    %347 = vmatpush1.msra.mxu0 0.0
    %348 = vmatprep.subr.mxu0 0.0
    %349 = vmatpush1.msra.mxu0 0.0
    %350 = vmatprep.subr.mxu0 0.0
    %351 = vmatpush1.msra.mxu0 0.0
    %352 = vmatprep.subr.mxu0 0.0
    %353 = vmatpush1.msra.mxu0 0.0
    %354 = vmatprep.subr.mxu0 0.0
    %355 = vmatpush1.msra.mxu0 0.0
    %356 = vmatprep.subr.mxu0 0.0
    %357 = vmatpush1.msra.mxu0 0.0
    %358 = vmatprep.subr.mxu0 0.0
    %359 = vmatpush1.msra.mxu0 0.0
    %360 = vmatprep.subr.mxu0 0.0
    %361 = vmatpush1.msra.mxu0 0.0
    %362 = vmatprep.subr.mxu0 0.0
    %363 = vmatpush1.msra.mxu0 0.0
    %364 = vmatprep.subr.mxu0 0.0
    %365 = vmatpush1.msra.mxu0 0.0
    %366 = vmatprep.subr.mxu0 0.0
    %367 = vmatpush1.msra.mxu0 0.0
    %368 = vmatprep.subr.mxu0 0.0
    %369 = vmatpush1.msra.mxu0 0.0
    %370 = vmatprep.subr.mxu0 0.0
    %371 = vmatpush1.msra.mxu0 0.0
    %372 = vmatprep.subr.mxu0 0.0
    %373 = vmatpush1.msra.mxu0 0.0
    %374 = vmatprep.mubr.f32.mxu0 0.0
    %375 = vmatmul.mubr.f32.gmra.mrb[0].mxu0 %v293
    %v376 = vpop.f32.mrb[0].mxu0
    %v377 = vadd.f32 0.0, %v376
    %v378 = vpop.f32.mrb[0].mxu0
    %379 = vdwg.mxu0
    %v380 = vmax.f32 %v377, 0.0
    %v381 = vld [vmem:[#allocation2 + $0x138] sm:$0xff]
    %v382 = vld [vmem:[#allocation2 + $0x140] sm:$0xff]
    %v383 = vld [vmem:[#allocation2 + $0x148] sm:$0xff]
    %v384 = vld [vmem:[#allocation2 + $0x150] sm:$0xff]
    %v385 = vld [vmem:[#allocation2 + $0x158] sm:$0xff]
    %v386 = vld [vmem:[#allocation2 + $0x160] sm:$0xff]
    %v387 = vld [vmem:[#allocation2 + $0x168] sm:$0xff]
    %v388 = vld [vmem:[#allocation2 + $0x170] sm:$0xff]
    %v389 = vld [vmem:[#allocation2 + $0x178] sm:$0xff]
    %v390 = vld [vmem:[#allocation2 + $0x180] sm:$0xff]
    %v391 = vld [vmem:[#allocation2 + $0x188] sm:$0xff]
    %v392 = vld [vmem:[#allocation2 + $0x190] sm:$0xff]
    %v393 = vld [vmem:[#allocation2 + $0x198] sm:$0xff]
    %v394 = vld [vmem:[#allocation2 + $0x1a0] sm:$0xff]
    %v395 = vld [vmem:[#allocation2 + $0x1a8] sm:$0xff]
    %v396 = vld [vmem:[#allocation2 + $0x1b0] sm:$0xff]
    %397 = vmatprep.subr.mxu0 0.0
    %398 = vmatpush1.msra.mxu0 %v381
    %399 = vmatprep.subr.mxu0 0.0
    %400 = vmatpush1.msra.mxu0 %v382
    %401 = vmatprep.subr.mxu0 0.0
    %402 = vmatpush1.msra.mxu0 %v383
    %403 = vmatprep.subr.mxu0 0.0
    %404 = vmatpush1.msra.mxu0 %v384
    %405 = vmatprep.subr.mxu0 0.0
    %406 = vmatpush1.msra.mxu0 %v385
    %407 = vmatprep.subr.mxu0 0.0
    %408 = vmatpush1.msra.mxu0 %v386
    %409 = vmatprep.subr.mxu0 0.0
    %410 = vmatpush1.msra.mxu0 %v387
    %411 = vmatprep.subr.mxu0 0.0
    %412 = vmatpush1.msra.mxu0 %v388
    %413 = vmatprep.subr.mxu0 0.0
    %414 = vmatpush1.msra.mxu0 %v389
    %415 = vmatprep.subr.mxu0 0.0
    %416 = vmatpush1.msra.mxu0 %v390
    %417 = vmatprep.subr.mxu0 0.0
    %418 = vmatpush1.msra.mxu0 %v391
    %419 = vmatprep.subr.mxu0 0.0
    %420 = vmatpush1.msra.mxu0 %v392
    %421 = vmatprep.subr.mxu0 0.0
    %422 = vmatpush1.msra.mxu0 %v393
    %423 = vmatprep.subr.mxu0 0.0
    %424 = vmatpush1.msra.mxu0 %v394
    %425 = vmatprep.subr.mxu0 0.0
    %426 = vmatpush1.msra.mxu0 %v395
    %427 = vmatprep.subr.mxu0 0.0
    %428 = vmatpush1.msra.mxu0 %v396
    %429 = vmatprep.subr.mxu0 0.0
    %430 = vmatpush1.msra.mxu0 0.0
    %431 = vmatprep.subr.mxu0 0.0
    %432 = vmatpush1.msra.mxu0 0.0
    %433 = vmatprep.subr.mxu0 0.0
    %434 = vmatpush1.msra.mxu0 0.0
    %435 = vmatprep.subr.mxu0 0.0
    %436 = vmatpush1.msra.mxu0 0.0
    %437 = vmatprep.subr.mxu0 0.0
    %438 = vmatpush1.msra.mxu0 0.0
    %439 = vmatprep.subr.mxu0 0.0
    %440 = vmatpush1.msra.mxu0 0.0
    %441 = vmatprep.subr.mxu0 0.0
    %442 = vmatpush1.msra.mxu0 0.0
    %443 = vmatprep.subr.mxu0 0.0
    %444 = vmatpush1.msra.mxu0 0.0
    %445 = vmatprep.subr.mxu0 0.0
    %446 = vmatpush1.msra.mxu0 0.0
    %447 = vmatprep.subr.mxu0 0.0
    %448 = vmatpush1.msra.mxu0 0.0
    %449 = vmatprep.subr.mxu0 0.0
    %450 = vmatpush1.msra.mxu0 0.0
    %451 = vmatprep.subr.mxu0 0.0
    %452 = vmatpush1.msra.mxu0 0.0
    %453 = vmatprep.subr.mxu0 0.0
    %454 = vmatpush1.msra.mxu0 0.0
    %455 = vmatprep.subr.mxu0 0.0
    %456 = vmatpush1.msra.mxu0 0.0
    %457 = vmatprep.subr.mxu0 0.0
    %458 = vmatpush1.msra.mxu0 0.0
    %459 = vmatprep.subr.mxu0 0.0
    %460 = vmatpush1.msra.mxu0 0.0
    %461 = vmatprep.mubr.f32.mxu0 0.0
    %462 = vmatmul.mubr.f32.gmra.mrb[0].mxu0 %v380
    %v463 = vpop.f32.mrb[0].mxu0
    %v464 = vadd.f32 0.0, %v463
    %v465 = vpop.f32.mrb[0].mxu0
    %466 = vdwg.mxu0
    %v467 = vmax.f32 %v464, 0.0
    %v468 = vld [vmem:[#allocation2 + $0x1b8] sm:$0xff]
    %v469 = vld [vmem:[#allocation2 + $0x1c0] sm:$0xff]
    %v470 = vld [vmem:[#allocation2 + $0x1c8] sm:$0xff]
    %v471 = vld [vmem:[#allocation2 + $0x1d0] sm:$0xff]
    %v472 = vld [vmem:[#allocation2 + $0x1d8] sm:$0xff]
    %v473 = vld [vmem:[#allocation2 + $0x1e0] sm:$0xff]
    %v474 = vld [vmem:[#allocation2 + $0x1e8] sm:$0xff]
    %v475 = vld [vmem:[#allocation2 + $0x1f0] sm:$0xff]
    %v476 = vld [vmem:[#allocation2 + $0x1f8] sm:$0xff]
    %v477 = vld [vmem:[#allocation2 + $0x200] sm:$0xff]
    %v478 = vld [vmem:[#allocation2 + $0x208] sm:$0xff]
    %v479 = vld [vmem:[#allocation2 + $0x210] sm:$0xff]
    %v480 = vld [vmem:[#allocation2 + $0x218] sm:$0xff]
    %v481 = vld [vmem:[#allocation2 + $0x220] sm:$0xff]
    %v482 = vld [vmem:[#allocation2 + $0x228] sm:$0xff]
    %v483 = vld [vmem:[#allocation2 + $0x230] sm:$0xff]
    %484 = vmatprep.subr.mxu0 0.0
    %485 = vmatpush1.msra.mxu0 %v468
    %486 = vmatprep.subr.mxu0 0.0
    %487 = vmatpush1.msra.mxu0 %v469
    %488 = vmatprep.subr.mxu0 0.0
    %489 = vmatpush1.msra.mxu0 %v470
    %490 = vmatprep.subr.mxu0 0.0
    %491 = vmatpush1.msra.mxu0 %v471
    %492 = vmatprep.subr.mxu0 0.0
    %493 = vmatpush1.msra.mxu0 %v472
    %494 = vmatprep.subr.mxu0 0.0
    %495 = vmatpush1.msra.mxu0 %v473
    %496 = vmatprep.subr.mxu0 0.0
    %497 = vmatpush1.msra.mxu0 %v474
    %498 = vmatprep.subr.mxu0 0.0
    %499 = vmatpush1.msra.mxu0 %v475
    %500 = vmatprep.subr.mxu0 0.0
    %501 = vmatpush1.msra.mxu0 %v476
    %502 = vmatprep.subr.mxu0 0.0
    %503 = vmatpush1.msra.mxu0 %v477
    %504 = vmatprep.subr.mxu0 0.0
    %505 = vmatpush1.msra.mxu0 %v478
    %506 = vmatprep.subr.mxu0 0.0
    %507 = vmatpush1.msra.mxu0 %v479
    %508 = vmatprep.subr.mxu0 0.0
    %509 = vmatpush1.msra.mxu0 %v480
    %510 = vmatprep.subr.mxu0 0.0
    %511 = vmatpush1.msra.mxu0 %v481
    %512 = vmatprep.subr.mxu0 0.0
    %513 = vmatpush1.msra.mxu0 %v482
    %514 = vmatprep.subr.mxu0 0.0
    %515 = vmatpush1.msra.mxu0 %v483
    %516 = vmatprep.subr.mxu0 0.0
    %517 = vmatpush1.msra.mxu0 0.0
    %518 = vmatprep.subr.mxu0 0.0
    %519 = vmatpush1.msra.mxu0 0.0
    %520 = vmatprep.subr.mxu0 0.0
    %521 = vmatpush1.msra.mxu0 0.0
    %522 = vmatprep.subr.mxu0 0.0
    %523 = vmatpush1.msra.mxu0 0.0
    %524 = vmatprep.subr.mxu0 0.0
    %525 = vmatpush1.msra.mxu0 0.0
    %526 = vmatprep.subr.mxu0 0.0
    %527 = vmatpush1.msra.mxu0 0.0
    %528 = vmatprep.subr.mxu0 0.0
    %529 = vmatpush1.msra.mxu0 0.0
    %530 = vmatprep.subr.mxu0 0.0
    %531 = vmatpush1.msra.mxu0 0.0
    %532 = vmatprep.subr.mxu0 0.0
    %533 = vmatpush1.msra.mxu0 0.0
    %534 = vmatprep.subr.mxu0 0.0
    %535 = vmatpush1.msra.mxu0 0.0
    %536 = vmatprep.subr.mxu0 0.0
    %537 = vmatpush1.msra.mxu0 0.0
    %538 = vmatprep.subr.mxu0 0.0
    %539 = vmatpush1.msra.mxu0 0.0
    %540 = vmatprep.subr.mxu0 0.0
    %541 = vmatpush1.msra.mxu0 0.0
    %542 = vmatprep.subr.mxu0 0.0
    %543 = vmatpush1.msra.mxu0 0.0
    %544 = vmatprep.subr.mxu0 0.0
    %545 = vmatpush1.msra.mxu0 0.0
    %546 = vmatprep.subr.mxu0 0.0
    %547 = vmatpush1.msra.mxu0 0.0
    %548 = vmatprep.mubr.f32.mxu0 0.0
    %549 = vmatmul.mubr.f32.gmra.mrb[0].mxu0 %v467
    %v550 = vpop.f32.mrb[0].mxu0
    %v551 = vadd.f32 0.0, %v550
    %v552 = vpop.f32.mrb[0].mxu0
    %553 = vdwg.mxu0
    %vm554 = vcmask 7168
    %555 = vst.msk [vmem:[%s6] sm:$0xff] %vm554, %v551
    // Predicated region
    $region30: #{tpu_custom_call.1} parent=1 // pred_check
      _
    $region31: #{tpu_custom_call.1} parent=1 // pred_check_branch
      %557 = sbr.rel (0) target = $region33
    $region32: #{tpu_custom_call.1} parent=1 // pred_region
      _
    $region33: #{tpu_custom_call.1} parent=1 // pred_fallthru
      _
    // Predicated region
    $region34: #{tpu_custom_call.1} parent=1 // pred_check
      _
    $region35: #{tpu_custom_call.1} parent=1 // pred_check_branch
      %559 = sbr.rel (0) target = $region37
    $region36: #{tpu_custom_call.1} parent=1 // pred_region
      _
    $region37: #{tpu_custom_call.1} parent=1 // pred_fallthru
      _
    %560 = vsyncpa [#allocation3], 1

</llo_original>
